<compile_context>
chip_gen: v5e
topology: v5e:2x2
jax: 0.10.0
libtpu: 0.0.40
codegen_flags: <defaults>
</compile_context>

<pallas_src>
import functools
import math

import jax
import jax.numpy as jnp
from jax.experimental import pallas as pl
from jax.experimental.pallas import tpu as pltpu

LANES = 128
MAX_TILE_ROWS = 1024  # 1024 * 128 * 4B = 512 KiB per f32 input block


def _bce_blur_kernel(pred_ref, true_ref, out_ref, *, inv_alpha):
    t = pl.program_id(1)

    @pl.when(t == 0)
    def _():
        out_ref[...] = jnp.zeros_like(out_ref)

    x = pred_ref[...].astype(jnp.float32)
    y = true_ref[...].astype(jnp.float32)

    # Numerically stable BCE-with-logits (matches torch.nn.BCEWithLogitsLoss):
    #   max(x, 0) - x*y + log(1 + exp(-|x|))
    # Reuse e = exp(-|x|) for the sigmoid too (one fewer transcendental).
    e = jnp.exp(-jnp.abs(x))
    bce = jnp.maximum(x, 0.0) - x * y + jnp.log1p(e)

    inv = 1.0 / (1.0 + e)
    p = jnp.where(x >= 0.0, inv, e * inv)  # == sigmoid(x), exact
    dx = p - y
    alpha_factor = 1.0 - jnp.exp((dx - 1.0) * inv_alpha)
    loss = bce * alpha_factor

    # Reduce the (tile_rows, 128) tile to a vreg-shaped (8, 128) partial sum.
    # Groups of 8 rows are native sublane tiles, so the reshape is
    # layout-preserving and the reduction is a pure VPU add-tree.
    partial = loss.reshape(-1, 8, LANES).sum(axis=0)
    out_ref[...] += partial.reshape(1, 8, LANES)


def bce_blur_with_logits_loss(pred, true, alpha=0.5):
    """Scalar mean of alpha-blurred BCE-with-logits loss."""
    assert pred.shape == true.shape
    total = int(pred.size)
    inv_alpha = 1.0 / (float(alpha) + 1e-4)

    def _prep(a):
        a = a.reshape(-1)
        # Keep narrow float dtypes (bf16/f16/f32) as-is; upcast happens
        # in-kernel so HBM traffic stays minimal.
        if not (jnp.issubdtype(a.dtype, jnp.floating) and a.dtype.itemsize <= 4):
            a = a.astype(jnp.float32)
        return a

    pred_f = _prep(pred)
    true_f = _prep(true)

    rows = -(-total // LANES)
    if rows <= MAX_TILE_ROWS:
        tile_rows = -(-rows // 8) * 8  # round up to sublane multiple
    else:
        tile_rows = MAX_TILE_ROWS
    block = tile_rows * LANES

    padded = -(-total // block) * block
    pad = padded - total
    if pad:
        # Zero padding; its exact contribution is subtracted analytically below.
        pred_f = jnp.pad(pred_f, (0, pad))
        true_f = jnp.pad(true_f, (0, pad))

    n_rows = padded // LANES
    n_blocks = n_rows // tile_rows
    # Outer "parallel" chunk axis (useful on v7x's 2 TensorCores); only split
    # when it divides evenly so no extra padding is introduced for it.
    n_chunks = 2 if (n_blocks >= 2 and n_blocks % 2 == 0) else 1
    inner = n_blocks // n_chunks

    pred2 = pred_f.reshape(n_rows, LANES)
    true2 = true_f.reshape(n_rows, LANES)

    kernel = functools.partial(_bce_blur_kernel, inv_alpha=inv_alpha)
    in_map = lambda c, t: (c * inner + t, 0)

    partials = pl.pallas_call(
        kernel,
        out_shape=jax.ShapeDtypeStruct((n_chunks, 8, LANES), jnp.float32),
        grid_spec=pltpu.PrefetchScalarGridSpec(
            num_scalar_prefetch=0,
            grid=(n_chunks, inner),
            in_specs=[
                pl.BlockSpec((tile_rows, LANES), in_map),
                pl.BlockSpec((tile_rows, LANES), in_map),
            ],
            out_specs=pl.BlockSpec((1, 8, LANES), lambda c, t: (c, 0, 0)),
        ),
        compiler_params=pltpu.CompilerParams(
            dimension_semantics=("parallel", "arbitrary")),
    )(pred2, true2)

    total_sum = jnp.sum(partials)
    if pad:
        # Each zero-padded (pred=0, true=0) element contributes exactly:
        #   ln(2) * (1 - exp(-0.5 / (alpha + 1e-4)))
        pad_contrib = math.log(2.0) * (1.0 - math.exp(-0.5 * inv_alpha))
        total_sum = total_sum - jnp.float32(pad * pad_contrib)
    return total_sum / jnp.float32(total)


def _reference(pred, true, alpha=0.5):
    x = pred.astype(jnp.float32)
    y = true.astype(jnp.float32)
    bce = jnp.maximum(x, 0.0) - x * y + jnp.log1p(jnp.exp(-jnp.abs(x)))
    p = jax.nn.sigmoid(x)
    dx = p - y
    af = 1.0 - jnp.exp((dx - 1.0) / (alpha + 0.0001))
    return jnp.mean(bce * af)


if __name__ == "__main__":
    key = jax.random.PRNGKey(0)
    k1, k2 = jax.random.split(key)
    # PyTorch inputs would be NCHW logits/targets; kernel flattens internally.
    pred = jax.random.normal(k1, (2, 4, 16, 16), dtype=jnp.float32)
    true = (jax.random.uniform(k2, (2, 4, 16, 16)) > 0.5).astype(jnp.float32)

    out = bce_blur_with_logits_loss(pred, true, alpha=0.5)
    out = jax.block_until_ready(out)

    ref = _reference(pred, true, alpha=0.5)
    assert jnp.allclose(out, ref, rtol=1e-5, atol=1e-6), (out, ref)
    print("KERNEL_OK")
</pallas_src>

<mosaic_0001>
module attributes {stable_mosaic.version = 11 : i64} {
  func.func @_bce_blur_kernel(%arg0: i32, %arg1: i32, %arg2: memref<16x128xf32, #tpu.memory_space<vmem>>, %arg3: memref<16x128xf32, #tpu.memory_space<vmem>>, %arg4: memref<1x8x128xf32, #tpu.memory_space<vmem>>) attributes {dimension_semantics = [#tpu.dimension_semantics<parallel>, #tpu.dimension_semantics<arbitrary>], iteration_bounds = array<i64: 1, 1>, scalar_prefetch = 0 : i64, scratch_operands = 0 : i64, tpu.core_type = #tpu.core_type<tc>, window_params = [{transform_indices = @transform_0, window_bounds = array<i64: 16, 128>}, {transform_indices = @transform_1, window_bounds = array<i64: 16, 128>}, {transform_indices = @transform_2, window_bounds = array<i64: 1, 8, 128>}]} {
    %c0_i32 = arith.constant 0 : i32
    %0 = arith.cmpi eq, %arg1, %c0_i32 : i32
    %1 = arith.extui %0 : i1 to i32
    %c0_i32_0 = arith.constant 0 : i32
    %2 = arith.cmpi ne, %1, %c0_i32_0 : i32
    scf.if %2 {
      %cst_18 = arith.constant 0.000000e+00 : f32
      %38 = vector.broadcast %cst_18 : f32 to vector<1x8x128xf32>
      %c0_19 = arith.constant 0 : index
      %c0_20 = arith.constant 0 : index
      %c0_21 = arith.constant 0 : index
      %39 = vector.load %arg4[%c0_19, %c0_20, %c0_21] : memref<1x8x128xf32, #tpu.memory_space<vmem>>, vector<1x8x128xf32>
      tpu.vector_store %arg4[%c0_19, %c0_20, %c0_21], %38 {strides = array<i32>} : memref<1x8x128xf32, #tpu.memory_space<vmem>>, vector<1x8x128xf32>,
    } else {
    }
    %c0 = arith.constant 0 : index
    %c0_1 = arith.constant 0 : index
    %3 = vector.load %arg2[%c0, %c0_1] : memref<16x128xf32, #tpu.memory_space<vmem>>, vector<16x128xf32>
    %c0_2 = arith.constant 0 : index
    %c0_3 = arith.constant 0 : index
    %4 = vector.load %arg3[%c0_2, %c0_3] : memref<16x128xf32, #tpu.memory_space<vmem>>, vector<16x128xf32>
    %5 = math.absf %3 : vector<16x128xf32>
    %cst = arith.constant 0.000000e+00 : f32
    %6 = vector.broadcast %cst : f32 to vector<16x128xf32>
    %7 = arith.subf %6, %5 : vector<16x128xf32>
    %8 = math.exp %7 : vector<16x128xf32>
    %cst_4 = arith.constant 0.000000e+00 : f32
    %9 = vector.broadcast %cst_4 : f32 to vector<16x128xf32>
    %10 = arith.maximumf %3, %9 : vector<16x128xf32>
    %11 = arith.mulf %3, %4 : vector<16x128xf32>
    %12 = arith.subf %10, %11 : vector<16x128xf32>
    %13 = math.log1p %8 : vector<16x128xf32>
    %14 = arith.addf %12, %13 : vector<16x128xf32>
    %cst_5 = arith.constant 1.000000e+00 : f32
    %15 = vector.broadcast %cst_5 : f32 to vector<16x128xf32>
    %16 = arith.addf %15, %8 : vector<16x128xf32>
    %cst_6 = arith.constant 1.000000e+00 : f32
    %17 = vector.broadcast %cst_6 : f32 to vector<16x128xf32>
    %18 = arith.divf %17, %16 : vector<16x128xf32>
    %cst_7 = arith.constant 0.000000e+00 : f32
    %19 = vector.broadcast %cst_7 : f32 to vector<16x128xf32>
    %20 = arith.cmpf oge, %3, %19 : vector<16x128xf32>
    %21 = arith.mulf %8, %18 : vector<16x128xf32>
    %22 = arith.select %20, %18, %21 : vector<16x128xi1>, vector<16x128xf32>
    %23 = arith.subf %22, %4 : vector<16x128xf32>
    %cst_8 = arith.constant 1.000000e+00 : f32
    %24 = vector.broadcast %cst_8 : f32 to vector<16x128xf32>
    %25 = arith.subf %23, %24 : vector<16x128xf32>
    %cst_9 = arith.constant 1.999600e+00 : f32
    %26 = vector.broadcast %cst_9 : f32 to vector<16x128xf32>
    %27 = arith.mulf %25, %26 : vector<16x128xf32>
    %28 = math.exp %27 : vector<16x128xf32>
    %cst_10 = arith.constant 1.000000e+00 : f32
    %29 = vector.broadcast %cst_10 : f32 to vector<16x128xf32>
    %30 = arith.subf %29, %28 : vector<16x128xf32>
    %31 = arith.mulf %14, %30 : vector<16x128xf32>
    %32 = vector.shape_cast %31 : vector<16x128xf32> to vector<2x8x128xf32>
    %cst_11 = arith.constant dense<0.000000e+00> : vector<8x128xf32>
    %33 = vector.multi_reduction <add>, %32, %cst_11 [0] : vector<2x8x128xf32> to vector<8x128xf32>
    %c0_12 = arith.constant 0 : index
    %c0_13 = arith.constant 0 : index
    %c0_14 = arith.constant 0 : index
    %34 = vector.load %arg4[%c0_12, %c0_13, %c0_14] : memref<1x8x128xf32, #tpu.memory_space<vmem>>, vector<1x8x128xf32>
    %35 = vector.shape_cast %33 : vector<8x128xf32> to vector<1x8x128xf32>
    %36 = arith.addf %34, %35 : vector<1x8x128xf32>
    %c0_15 = arith.constant 0 : index
    %c0_16 = arith.constant 0 : index
    %c0_17 = arith.constant 0 : index
    %37 = vector.load %arg4[%c0_15, %c0_16, %c0_17] : memref<1x8x128xf32, #tpu.memory_space<vmem>>, vector<1x8x128xf32>
    tpu.vector_store %arg4[%c0_15, %c0_16, %c0_17], %36 {strides = array<i32>} : memref<1x8x128xf32, #tpu.memory_space<vmem>>, vector<1x8x128xf32>,
    return
  }
  func.func @transform_0(%arg0: i32, %arg1: i32) -> (i32, i32) {
    %c1_i32 = arith.constant 1 : i32
    %0 = arith.muli %arg0, %c1_i32 : i32
    %1 = arith.addi %0, %arg1 : i32
    %c0_i32 = arith.constant 0 : i32
    %c0_i32_0 = arith.constant 0 : i32
    return %1, %c0_i32 : i32, i32
  }
  func.func @transform_1(%arg0: i32, %arg1: i32) -> (i32, i32) {
    %c1_i32 = arith.constant 1 : i32
    %0 = arith.muli %arg0, %c1_i32 : i32
    %1 = arith.addi %0, %arg1 : i32
    %c0_i32 = arith.constant 0 : i32
    %c0_i32_0 = arith.constant 0 : i32
    return %1, %c0_i32 : i32, i32
  }
  func.func @transform_2(%arg0: i32, %arg1: i32) -> (i32, i32, i32) {
    %c0_i32 = arith.constant 0 : i32
    %c0_i32_0 = arith.constant 0 : i32
    %c0_i32_1 = arith.constant 0 : i32
    return %arg0, %c0_i32, %c0_i32_0 : i32, i32, i32
  }
}

</mosaic_0001>

<llo_original>
// kernel: tpu_custom_call.1
$region0: #{tpu_custom_call.1}
  #allocation0 [shape = 'u32[]', space=smem, size = 0x4, offset = 0x4, fixed_abs, tag = 'smem constant byte address 0x4 - core index']
  #allocation1 [shape = 'u32[72,128]{1,0:T(1,128)}', space=vmem, size = 0x9000, scoped, tag = 'internal scratch']
  %s0 = inlined_call_operand.hbm [shape: f32[16,128], index: 0, kind: input, shape index: {}]
  %s1 = inlined_call_operand.hbm [shape: f32[16,128], index: 1, kind: input, shape index: {}]
  %s2 = inlined_call_operand.hbm [shape: f32[1,8,128], index: 2, kind: output, shape index: {}]
  %s3 = sld [smem:[#allocation0]]
  $region30: #{tpu_custom_call.1} parent=0
    _
  %s5 = ssub.s32 1, %s3
  %s6 = scalar_select 0, %s5, %s3
  $region1: #{tpu_custom_call.1} parent=0
    #allocation2 [shape = 'u8[8192]{0}', space=vmem, size = 0x2000, scoped, tag = 'input window, operand 0, single buffered']
    #allocation3 [shape = 's32[1]{0}', space=sflag, size = 0x4, scoped, tag = 'scoped memory for tpu_custom_call.1']
    #allocation4 [shape = 's32[1]{0}', space=sflag, size = 0x4, scoped, tag = 'scoped memory for tpu_custom_call.1']
    #allocation5 [shape = 'u8[8192]{0}', space=vmem, size = 0x2000, scoped, tag = 'input window, operand 1, single buffered']
    #allocation6 [shape = 's32[1]{0}', space=sflag, size = 0x4, scoped, tag = 'scoped memory for tpu_custom_call.1']
    #allocation7 [shape = 'u8[4096]{0}', space=vmem, size = 0x1000, scoped, tag = 'output window, operand 0, single buffered']
    %7 = vsyncpa [#allocation3], 0
    %8 = vsyncpa [#allocation6], 0
    %9 = vsyncpa [#allocation4], 0
    // Predicated region
    $region2: #{tpu_custom_call.1} parent=1 // pred_check
      _
    $region3: #{tpu_custom_call.1} parent=1 // pred_check_branch
      %11 = sbr.rel (0) target = $region5
    $region4: #{tpu_custom_call.1} parent=1 // pred_region
      %s12 = sadd.s32 0, 0
      %s13 = smul.u32 2, %s12
      %15 = vsyncadd [#allocation3], 0
      %s16 = smul.addr %s13, 8
      %s17 = scalar_lea.hbm %s0, %s16
      %s18 = sshll.u32 %s17, 4
      %s19 = int_to_ptr.hbm [resolvable:$true] %s18
      %s20 = sshll.u32 [#allocation2], 4
      %s21 = int_to_ptr.vmem [resolvable:$true] %s20
      %26 = dma.hbm_to_vmem [thread:$0]  %s19, 256, %s21, [#allocation3], 128, 128, 8
    $region5: #{tpu_custom_call.1} parent=1 // pred_fallthru
      _
    // Predicated region
    $region6: #{tpu_custom_call.1} parent=1 // pred_check
      _
    $region7: #{tpu_custom_call.1} parent=1 // pred_check_branch
      %28 = sbr.rel (0) target = $region9
    $region8: #{tpu_custom_call.1} parent=1 // pred_region
      %s29 = sadd.s32 0, 0
      %s30 = smul.u32 2, %s29
      %32 = vsyncadd [#allocation6], 0
      %s33 = smul.addr %s30, 8
      %s34 = scalar_lea.hbm %s1, %s33
      %s35 = sshll.u32 %s34, 4
      %s36 = int_to_ptr.hbm [resolvable:$true] %s35
      %s37 = sshll.u32 [#allocation5], 4
      %s38 = int_to_ptr.vmem [resolvable:$true] %s37
      %43 = dma.hbm_to_vmem [thread:$0]  %s36, 256, %s38, [#allocation6], 128, 128, 8
    $region9: #{tpu_custom_call.1} parent=1 // pred_fallthru
      _
    // Predicated region
    $region10: #{tpu_custom_call.1} parent=1 // pred_check
      _
    $region11: #{tpu_custom_call.1} parent=1 // pred_check_branch
      %45 = sbr.rel (0) target = $region13
    $region12: #{tpu_custom_call.1} parent=1 // pred_region
      %47 = dma.done [#allocation3], 256
    $region13: #{tpu_custom_call.1} parent=1 // pred_fallthru
      _
    // Predicated region
    $region14: #{tpu_custom_call.1} parent=1 // pred_check
      _
    $region15: #{tpu_custom_call.1} parent=1 // pred_check_branch
      %49 = sbr.rel (0) target = $region17
    $region16: #{tpu_custom_call.1} parent=1 // pred_region
      %51 = dma.done [#allocation6], 256
    $region17: #{tpu_custom_call.1} parent=1 // pred_fallthru
      _
    %s52 = sadd.s32 0, 0
    %s53 = smul.u32 2, %s52
    %s54 = sadd.s32 0, 0
    %s55 = smul.u32 2, %s54
    %p56 = scmp.eq.s32.totalorder 0, 0
    // Predicated region
    $region18: #{tpu_custom_call.1} parent=1 // pred_check
      %p57 = pneg %p56
    $region19: #{tpu_custom_call.1} parent=1 // pred_check_branch
      %59 = sbr.rel (%p57) target = $region21
    $region20: #{tpu_custom_call.1} parent=1 // pred_region
      %60 = vst [vmem:[#allocation7] sm:$0xff] 0.0
    $region21: #{tpu_custom_call.1} parent=1 // pred_fallthru
      _
    %v61 = vld [vmem:[#allocation2] sm:$0xff]
    %v62 = vld [vmem:[#allocation2 + $0x8] sm:$0xff]
    %v63 = vld [vmem:[#allocation5] sm:$0xff]
    %v64 = vld [vmem:[#allocation5 + $0x8] sm:$0xff]
    %v65 = vand.u32 2147483647, %v61
    %v66 = vand.u32 2147483647, %v62
    %v67 = vsub.f32 0.0, %v65
    %v68 = vsub.f32 0.0, %v66
    %v69 = vmul.f32 %v67, 1.442695
    %v70 = vpow.pop %v69
    %v71 = vmul.f32 %v68, 1.442695
    %v72 = vpow.pop %v71
    %v73 = vmax.f32 %v61, 0.0
    %v74 = vmax.f32 %v62, 0.0
    %v75 = vmul.f32 %v61, %v63
    %v76 = vmul.f32 %v62, %v64
    %v77 = vsub.f32 %v73, %v75
    %v78 = vsub.f32 %v74, %v76
    %v79 = vadd.f32 %v70, 1.0
    %v80 = vlog2.pop %v79
    %v81 = vmul.f32 %v80, 0.6931472
    %v82 = vmul.f32 -0.5, %v70
    %v83 = vadd.f32 %v82, 1.0
    %v84 = vmul.f32 %v83, %v70
    %v85 = vand.u32 2147483647, %v70
    %vm86 = vcmp.lt.f32.partialorder %v85, 0.0004427343
    %v87 = vsel %vm86, %v84, %v81
    %v88 = vadd.f32 %v72, 1.0
    %v89 = vlog2.pop %v88
    %v90 = vmul.f32 %v89, 0.6931472
    %v91 = vmul.f32 -0.5, %v72
    %v92 = vadd.f32 %v91, 1.0
    %v93 = vmul.f32 %v92, %v72
    %v94 = vand.u32 2147483647, %v72
    %vm95 = vcmp.lt.f32.partialorder %v94, 0.0004427343
    %v96 = vsel %vm95, %v93, %v90
    %v97 = vadd.f32 %v77, %v87
    %v98 = vadd.f32 %v78, %v96
    %v99 = vadd.f32 %v70, 1.0
    %v100 = vadd.f32 %v72, 1.0
    %v101 = vrcp.pop %v99
    %v102 = vmul.f32 %v99, %v101
    %v103 = vsub.f32 1.0, %v102
    %v104 = vmul.f32 %v101, %v103
    %v105 = vadd.f32 %v101, %v104
    %vm106 = vweird.f32 %v99
    %vm107 = vweird.f32 %v101
    %vm108 = vmor %vm106, %vm107
    %v109 = vsel %vm108, %v101, %v105
    %v110 = vand.u32 2147483647, %v99
    %vm111 = vcmp.eq.f32.partialorder %v110, 8.507059e+37
    %v112 = vand.u32 %v99, 2147483648
    %v113 = vor.u32 1.1754944e-38, %v112
    %v114 = vsel %vm111, %v113, %v109
    %v115 = vmul.f32 1.0, %v114
    %v116 = vrcp.pop %v100
    %v117 = vmul.f32 %v100, %v116
    %v118 = vsub.f32 1.0, %v117
    %v119 = vmul.f32 %v116, %v118
    %v120 = vadd.f32 %v116, %v119
    %vm121 = vweird.f32 %v100
    %vm122 = vweird.f32 %v116
    %vm123 = vmor %vm121, %vm122
    %v124 = vsel %vm123, %v116, %v120
    %v125 = vand.u32 2147483647, %v100
    %vm126 = vcmp.eq.f32.partialorder %v125, 8.507059e+37
    %v127 = vand.u32 %v100, 2147483648
    %v128 = vor.u32 1.1754944e-38, %v127
    %v129 = vsel %vm126, %v128, %v124
    %v130 = vmul.f32 1.0, %v129
    %vm131 = vcmp.ge.f32.partialorder %v61, 0.0
    %vm132 = vcmp.ge.f32.partialorder %v62, 0.0
    %v133 = vmul.f32 %v70, %v115
    %v134 = vmul.f32 %v72, %v130
    %v135 = vsel %vm131, %v115, %v133
    %v136 = vsel %vm132, %v130, %v134
    %v137 = vsub.f32 %v135, %v63
    %v138 = vsub.f32 %v136, %v64
    %v139 = vsub.f32 %v137, 1.0
    %v140 = vsub.f32 %v138, 1.0
    %v141 = vmul.f32 %v139, 1.9996
    %v142 = vmul.f32 %v140, 1.9996
    %v143 = vmul.f32 %v141, 1.442695
    %v144 = vpow.pop %v143
    %v145 = vmul.f32 %v142, 1.442695
    %v146 = vpow.pop %v145
    %v147 = vsub.f32 1.0, %v144
    %v148 = vsub.f32 1.0, %v146
    %v149 = vmul.f32 %v97, %v147
    %v150 = vmul.f32 %v98, %v148
    %v151 = vadd.f32 %v149, %v150
    %v152 = vld [vmem:[#allocation7] sm:$0xff]
    %v153 = vadd.f32 %v152, %v151
    %154 = vst [vmem:[#allocation7] sm:$0xff] %v153
    // Predicated region
    $region22: #{tpu_custom_call.1} parent=1 // pred_check
      _
    $region23: #{tpu_custom_call.1} parent=1 // pred_check_branch
      %156 = sbr.rel (0) target = $region25
    $region24: #{tpu_custom_call.1} parent=1 // pred_region
      %158 = vsyncadd [#allocation4], 0
      %s160 = sshll.u32 [#allocation7], 4
      %s161 = int_to_ptr.vmem [resolvable:$true] %s160
      %s162 = sshll.u32 %s2, 4
      %s163 = int_to_ptr.hbm [resolvable:$true] %s162
      %165 = dma.vmem_to_hbm [thread:$0]  %s161, 128, %s163, [#allocation4]
    $region25: #{tpu_custom_call.1} parent=1 // pred_fallthru
      _
    // Predicated region
    $region26: #{tpu_custom_call.1} parent=1 // pred_check
      _
    $region27: #{tpu_custom_call.1} parent=1 // pred_check_branch
      %167 = sbr.rel (0) target = $region29
    $region28: #{tpu_custom_call.1} parent=1 // pred_region
      %169 = dma.done [#allocation4], 128
    $region29: #{tpu_custom_call.1} parent=1 // pred_fallthru
      _
    %170 = vsyncpa [#allocation3], 1
    %171 = vsyncpa [#allocation6], 1
    %172 = vsyncpa [#allocation4], 1

</llo_original>
